<compile_context>
chip_gen: v7x
topology: tpu7x:2x2x1
jax: 0.10.0
libtpu: 0.0.40
codegen_flags: <defaults>
</compile_context>

<pallas_src>
import functools

import jax
import jax.numpy as jnp
from jax.experimental import pallas as pl
from jax.experimental.pallas import tpu as pltpu


def _round_up(x, m):
    return ((x + m - 1) // m) * m


def _make_mlp_kernel(n_linear):
    """Kernel for a chain of `n_linear` Linear layers (ReLU between all but the
    last) plus a residual add of the most-recent history state.

    Ref order:
      xs, xa,
      w0_state, w0_action, w1, ..., w_{n_linear-1},     (n_linear + 1 weight refs, bf16)
      b0, ..., b_{n_linear-1},                          (fp32, each (1, out_pad_i))
      s_last, out                                       (fp32, (TB, out_pad_last))
    """

    def kernel(*refs):
        xs_ref = refs[0]
        xa_ref = refs[1]
        w_refs = refs[2:3 + n_linear]                     # n_linear + 1 weights
        b_refs = refs[3 + n_linear:3 + 2 * n_linear]      # n_linear biases
        s_last_ref = refs[3 + 2 * n_linear]
        out_ref = refs[4 + 2 * n_linear]

        # Layer 0: concat(xs, xa) @ W0 expressed as a split matmul (no HBM concat).
        h = jnp.dot(xs_ref[...], w_refs[0][...],
                    preferred_element_type=jnp.float32)
        h = h + jnp.dot(xa_ref[...], w_refs[1][...],
                        preferred_element_type=jnp.float32)
        h = h + b_refs[0][...]
        if n_linear > 1:
            h = jnp.maximum(h, 0.0)                       # ReLU (fp32 epilogue)

        for li in range(1, n_linear):
            wv = w_refs[li + 1][...]                      # bf16 [prev_pad, out_pad]
            h = jnp.dot(h.astype(wv.dtype), wv,
                        preferred_element_type=jnp.float32)
            h = h + b_refs[li][...]
            if li < n_linear - 1:
                h = jnp.maximum(h, 0.0)

        out_ref[...] = h + s_last_ref[...]                # residual add, fp32

    return kernel


@functools.partial(jax.jit, static_argnames=("batch_tile",))
def mlp_forward_pallas(state, action, weights, biases, *, batch_tile=256):
    """
    state   : [B, n_history, obs_dim]    float32
    action  : [B, n_history, action_dim] float32
    weights : list of [in_i, out_i] float32  (transposed vs torch's [out, in])
    biases  : list of [1, out_i]    float32
    returns : [B, obs_dim] float32
    """
    B, n_history, obs_dim = state.shape
    action_dim = action.shape[-1]
    ds = n_history * obs_dim
    da = n_history * action_dim

    n_linear = len(weights)
    out_dims = [w.shape[1] for w in weights]
    out_pads = [_round_up(d, 128) for d in out_dims]      # lane-dense widths
    out_pad_last = out_pads[-1]

    # ---- parameters: bf16 weights padded to 128-aligned widths, fp32 biases ----
    w_list = []
    w0 = jnp.pad(weights[0].astype(jnp.bfloat16),
                 ((0, 0), (0, out_pads[0] - out_dims[0])))
    w_list.append(w0[:ds])        # state part  [ds, h0_pad]
    w_list.append(w0[ds:])        # action part [da, h0_pad]
    for li in range(1, n_linear):
        w = jnp.pad(weights[li].astype(jnp.bfloat16),
                    ((0, out_pads[li - 1] - weights[li].shape[0]),
                     (0, out_pads[li] - out_dims[li])))
        w_list.append(w)

    b_list = [
        jnp.pad(b.reshape(1, -1).astype(jnp.float32),
                ((0, 0), (0, out_pads[li] - out_dims[li])))
        for li, b in enumerate(biases)
    ]

    # ---- activations: bf16 inputs, batch padded to the tile size ----
    if B >= batch_tile:
        tb = batch_tile
    else:
        tb = _round_up(B, 16)     # bf16 sublane packing -> multiple of 16
    b_pad = _round_up(B, tb)

    xs = jnp.pad(state.reshape(B, ds).astype(jnp.bfloat16),
                 ((0, b_pad - B), (0, 0)))
    xa = jnp.pad(action.reshape(B, da).astype(jnp.bfloat16),
                 ((0, b_pad - B), (0, 0)))
    s_last = jnp.pad(state[:, -1].astype(jnp.float32),
                     ((0, b_pad - B), (0, out_pad_last - obs_dim)))

    kernel = _make_mlp_kernel(n_linear)

    grid = (b_pad // tb,)
    batched = lambda shp: pl.BlockSpec(shp, lambda i: (i, 0))
    resident = lambda shp: pl.BlockSpec(shp, lambda i: (0, 0))  # stays in VMEM

    in_specs = (
        [batched((tb, ds)), batched((tb, da))]
        + [resident(w.shape) for w in w_list]
        + [resident(b.shape) for b in b_list]
        + [batched((tb, out_pad_last))]
    )

    out = pl.pallas_call(
        kernel,
        out_shape=jax.ShapeDtypeStruct((b_pad, out_pad_last), jnp.float32),
        grid=grid,
        in_specs=in_specs,
        out_specs=batched((tb, out_pad_last)),
        compiler_params=pltpu.CompilerParams(
            dimension_semantics=("parallel",),
        ),
    )(xs, xa, *w_list, *b_list, s_last)

    return out[:B, :obs_dim]


def init_mlp_params(key, obs_dim, action_dim, n_history, architecture):
    """Deterministic synthetic parameters matching MLP.__init__ layer shapes."""
    weights, biases = [], []
    in_dim = (obs_dim + action_dim) * n_history
    dims = list(architecture) + [obs_dim]
    for out_dim in dims:
        key, kw, kb = jax.random.split(key, 3)
        scale = 1.0 / jnp.sqrt(jnp.float32(in_dim))
        # Stored as [in, out] (transposed vs torch nn.Linear's [out, in]).
        w = jax.random.uniform(kw, (in_dim, out_dim), jnp.float32, -scale, scale)
        b = jax.random.uniform(kb, (1, out_dim), jnp.float32, -scale, scale)
        weights.append(w)
        biases.append(b)
        in_dim = out_dim
    return weights, biases


def mlp_forward_reference(state, action, weights, biases):
    """Pure-JAX reference matching the kernel's numerics:
    bf16 matmul inputs, fp32 accumulation / bias / ReLU / residual."""
    B = state.shape[0]
    x = jnp.concatenate([state.reshape(B, -1), action.reshape(B, -1)], axis=1)
    h = x.astype(jnp.float32)
    n = len(weights)
    for i, (w, b) in enumerate(zip(weights, biases)):
        h = jnp.dot(h.astype(jnp.bfloat16), w.astype(jnp.bfloat16),
                    preferred_element_type=jnp.float32)
        h = h + b.astype(jnp.float32)
        if i < n - 1:
            h = jnp.maximum(h, 0.0)
    return h + state[:, -1].astype(jnp.float32)


if __name__ == "__main__":
    # Small shapes consistent with the module's forward.
    B = 2
    obs_dim = 8
    action_dim = 2
    n_history = 1
    architecture = [32, 32]

    key = jax.random.PRNGKey(0)
    k_state, k_action, k_params = jax.random.split(key, 3)

    state = jax.random.normal(k_state, (B, n_history, obs_dim), jnp.float32)
    action = jax.random.normal(k_action, (B, n_history, action_dim), jnp.float32)
    weights, biases = init_mlp_params(
        k_params, obs_dim, action_dim, n_history, architecture
    )

    out = mlp_forward_pallas(state, action, weights, biases)
    out = jax.block_until_ready(out)
    ref = mlp_forward_reference(state, action, weights, biases)
    assert out.shape == (B, obs_dim), out.shape
    assert jnp.allclose(out, ref, atol=1e-3, rtol=1e-3), (out, ref)

    # Exercise the multi-tile batch grid path (batch padded + tiled; parameters
    # stay VMEM-resident via constant index maps).
    B2 = 40
    k_s2, k_a2 = jax.random.split(jax.random.PRNGKey(1))
    state2 = jax.random.normal(k_s2, (B2, n_history, obs_dim), jnp.float32)
    action2 = jax.random.normal(k_a2, (B2, n_history, action_dim), jnp.float32)
    out2 = jax.block_until_ready(
        mlp_forward_pallas(state2, action2, weights, biases, batch_tile=16)
    )
    ref2 = mlp_forward_reference(state2, action2, weights, biases)
    assert out2.shape == (B2, obs_dim), out2.shape
    assert jnp.allclose(out2, ref2, atol=1e-3, rtol=1e-3), (out2, ref2)

    print("KERNEL_OK")
</pallas_src>

<mosaic_0001>
module attributes {stable_mosaic.version = 11 : i64} {
  func.func @kernel(%arg0: i32, %arg1: memref<16x8xbf16, #tpu.memory_space<vmem>>, %arg2: memref<16x2xbf16, #tpu.memory_space<vmem>>, %arg3: memref<8x128xbf16, #tpu.memory_space<vmem>>, %arg4: memref<2x128xbf16, #tpu.memory_space<vmem>>, %arg5: memref<128x128xbf16, #tpu.memory_space<vmem>>, %arg6: memref<128x128xbf16, #tpu.memory_space<vmem>>, %arg7: memref<1x128xf32, #tpu.memory_space<vmem>>, %arg8: memref<1x128xf32, #tpu.memory_space<vmem>>, %arg9: memref<1x128xf32, #tpu.memory_space<vmem>>, %arg10: memref<16x128xf32, #tpu.memory_space<vmem>>, %arg11: memref<16x128xf32, #tpu.memory_space<vmem>>) attributes {dimension_semantics = [#tpu.dimension_semantics<parallel>], iteration_bounds = array<i64: 1>, scalar_prefetch = 0 : i64, scratch_operands = 0 : i64, tpu.core_type = #tpu.core_type<tc>, window_params = [{transform_indices = @transform_0, window_bounds = array<i64: 16, 8>}, {transform_indices = @transform_1, window_bounds = array<i64: 16, 2>}, {pipeline_mode = #tpu.pipeline_mode<synchronous>, transform_indices = @transform_2, window_bounds = array<i64: 8, 128>}, {pipeline_mode = #tpu.pipeline_mode<synchronous>, transform_indices = @transform_3, window_bounds = array<i64: 2, 128>}, {pipeline_mode = #tpu.pipeline_mode<synchronous>, transform_indices = @transform_4, window_bounds = array<i64: 128, 128>}, {pipeline_mode = #tpu.pipeline_mode<synchronous>, transform_indices = @transform_5, window_bounds = array<i64: 128, 128>}, {pipeline_mode = #tpu.pipeline_mode<synchronous>, transform_indices = @transform_6, window_bounds = array<i64: 1, 128>}, {pipeline_mode = #tpu.pipeline_mode<synchronous>, transform_indices = @transform_7, window_bounds = array<i64: 1, 128>}, {pipeline_mode = #tpu.pipeline_mode<synchronous>, transform_indices = @transform_8, window_bounds = array<i64: 1, 128>}, {transform_indices = @transform_9, window_bounds = array<i64: 16, 128>}, {transform_indices = @transform_10, window_bounds = array<i64: 16, 128>}]} {
    %c0 = arith.constant 0 : index
    %c0_0 = arith.constant 0 : index
    %0 = vector.load %arg1[%c0, %c0_0] : memref<16x8xbf16, #tpu.memory_space<vmem>>, vector<16x8xbf16>
    %c0_1 = arith.constant 0 : index
    %c0_2 = arith.constant 0 : index
    %1 = vector.load %arg3[%c0_1, %c0_2] : memref<8x128xbf16, #tpu.memory_space<vmem>>, vector<8x128xbf16>
    %cst = arith.constant dense<0.000000e+00> : vector<16x128xf32>
    %2 = tpu.matmul %0, %1, %cst {dimension_numbers = #tpu.dot_dimension_numbers<[1], [0], [0], [1], [0, 0, 1, 1], [], []>} : vector<16x8xbf16>, vector<8x128xbf16>, vector<16x128xf32> -> vector<16x128xf32>
    %c0_3 = arith.constant 0 : index
    %c0_4 = arith.constant 0 : index
    %3 = vector.load %arg2[%c0_3, %c0_4] : memref<16x2xbf16, #tpu.memory_space<vmem>>, vector<16x2xbf16>
    %c0_5 = arith.constant 0 : index
    %c0_6 = arith.constant 0 : index
    %4 = vector.load %arg4[%c0_5, %c0_6] : memref<2x128xbf16, #tpu.memory_space<vmem>>, vector<2x128xbf16>
    %cst_7 = arith.constant dense<0.000000e+00> : vector<16x128xf32>
    %5 = tpu.matmul %3, %4, %cst_7 {dimension_numbers = #tpu.dot_dimension_numbers<[1], [0], [0], [1], [0, 0, 1, 1], [], []>} : vector<16x2xbf16>, vector<2x128xbf16>, vector<16x128xf32> -> vector<16x128xf32>
    %6 = arith.addf %2, %5 : vector<16x128xf32>
    %c0_8 = arith.constant 0 : index
    %c0_9 = arith.constant 0 : index
    %7 = vector.load %arg7[%c0_8, %c0_9] : memref<1x128xf32, #tpu.memory_space<vmem>>, vector<1x128xf32>
    %8 = vector.broadcast %7 : vector<1x128xf32> to vector<16x128xf32>
    %9 = arith.addf %6, %8 : vector<16x128xf32>
    %cst_10 = arith.constant 0.000000e+00 : f32
    %10 = vector.broadcast %cst_10 : f32 to vector<16x128xf32>
    %11 = arith.maximumf %9, %10 : vector<16x128xf32>
    %c0_11 = arith.constant 0 : index
    %c0_12 = arith.constant 0 : index
    %12 = vector.load %arg5[%c0_11, %c0_12] : memref<128x128xbf16, #tpu.memory_space<vmem>>, vector<128x128xbf16>
    %13 = arith.truncf %11 : vector<16x128xf32> to vector<16x128xbf16>
    %cst_13 = arith.constant dense<0.000000e+00> : vector<16x128xf32>
    %14 = tpu.matmul %13, %12, %cst_13 {dimension_numbers = #tpu.dot_dimension_numbers<[1], [0], [0], [1], [0, 0, 1, 1], [], []>} : vector<16x128xbf16>, vector<128x128xbf16>, vector<16x128xf32> -> vector<16x128xf32>
    %c0_14 = arith.constant 0 : index
    %c0_15 = arith.constant 0 : index
    %15 = vector.load %arg8[%c0_14, %c0_15] : memref<1x128xf32, #tpu.memory_space<vmem>>, vector<1x128xf32>
    %16 = vector.broadcast %15 : vector<1x128xf32> to vector<16x128xf32>
    %17 = arith.addf %14, %16 : vector<16x128xf32>
    %cst_16 = arith.constant 0.000000e+00 : f32
    %18 = vector.broadcast %cst_16 : f32 to vector<16x128xf32>
    %19 = arith.maximumf %17, %18 : vector<16x128xf32>
    %c0_17 = arith.constant 0 : index
    %c0_18 = arith.constant 0 : index
    %20 = vector.load %arg6[%c0_17, %c0_18] : memref<128x128xbf16, #tpu.memory_space<vmem>>, vector<128x128xbf16>
    %21 = arith.truncf %19 : vector<16x128xf32> to vector<16x128xbf16>
    %cst_19 = arith.constant dense<0.000000e+00> : vector<16x128xf32>
    %22 = tpu.matmul %21, %20, %cst_19 {dimension_numbers = #tpu.dot_dimension_numbers<[1], [0], [0], [1], [0, 0, 1, 1], [], []>} : vector<16x128xbf16>, vector<128x128xbf16>, vector<16x128xf32> -> vector<16x128xf32>
    %c0_20 = arith.constant 0 : index
    %c0_21 = arith.constant 0 : index
    %23 = vector.load %arg9[%c0_20, %c0_21] : memref<1x128xf32, #tpu.memory_space<vmem>>, vector<1x128xf32>
    %24 = vector.broadcast %23 : vector<1x128xf32> to vector<16x128xf32>
    %25 = arith.addf %22, %24 : vector<16x128xf32>
    %c0_22 = arith.constant 0 : index
    %c0_23 = arith.constant 0 : index
    %26 = vector.load %arg10[%c0_22, %c0_23] : memref<16x128xf32, #tpu.memory_space<vmem>>, vector<16x128xf32>
    %27 = arith.addf %25, %26 : vector<16x128xf32>
    %c0_24 = arith.constant 0 : index
    %c0_25 = arith.constant 0 : index
    %28 = vector.load %arg11[%c0_24, %c0_25] : memref<16x128xf32, #tpu.memory_space<vmem>>, vector<16x128xf32>
    tpu.vector_store %arg11[%c0_24, %c0_25], %27 {strides = array<i32>} : memref<16x128xf32, #tpu.memory_space<vmem>>, vector<16x128xf32>,
    return
  }
  func.func @transform_0(%arg0: i32) -> (i32, i32) {
    %c0_i32 = arith.constant 0 : i32
    %c0_i32_0 = arith.constant 0 : i32
    return %arg0, %c0_i32 : i32, i32
  }
  func.func @transform_1(%arg0: i32) -> (i32, i32) {
    %c0_i32 = arith.constant 0 : i32
    %c0_i32_0 = arith.constant 0 : i32
    return %arg0, %c0_i32 : i32, i32
  }
  func.func @transform_2(%arg0: i32) -> (i32, i32) {
    %c0_i32 = arith.constant 0 : i32
    %c0_i32_0 = arith.constant 0 : i32
    %c0_i32_1 = arith.constant 0 : i32
    return %c0_i32, %c0_i32_0 : i32, i32
  }
  func.func @transform_3(%arg0: i32) -> (i32, i32) {
    %c0_i32 = arith.constant 0 : i32
    %c0_i32_0 = arith.constant 0 : i32
    %c0_i32_1 = arith.constant 0 : i32
    return %c0_i32, %c0_i32_0 : i32, i32
  }
  func.func @transform_4(%arg0: i32) -> (i32, i32) {
    %c0_i32 = arith.constant 0 : i32
    %c0_i32_0 = arith.constant 0 : i32
    %c0_i32_1 = arith.constant 0 : i32
    return %c0_i32, %c0_i32_0 : i32, i32
  }
  func.func @transform_5(%arg0: i32) -> (i32, i32) {
    %c0_i32 = arith.constant 0 : i32
    %c0_i32_0 = arith.constant 0 : i32
    %c0_i32_1 = arith.constant 0 : i32
    return %c0_i32, %c0_i32_0 : i32, i32
  }
  func.func @transform_6(%arg0: i32) -> (i32, i32) {
    %c0_i32 = arith.constant 0 : i32
    %c0_i32_0 = arith.constant 0 : i32
    %c0_i32_1 = arith.constant 0 : i32
    return %c0_i32, %c0_i32_0 : i32, i32
  }
  func.func @transform_7(%arg0: i32) -> (i32, i32) {
    %c0_i32 = arith.constant 0 : i32
    %c0_i32_0 = arith.constant 0 : i32
    %c0_i32_1 = arith.constant 0 : i32
    return %c0_i32, %c0_i32_0 : i32, i32
  }
  func.func @transform_8(%arg0: i32) -> (i32, i32) {
    %c0_i32 = arith.constant 0 : i32
    %c0_i32_0 = arith.constant 0 : i32
    %c0_i32_1 = arith.constant 0 : i32
    return %c0_i32, %c0_i32_0 : i32, i32
  }
  func.func @transform_9(%arg0: i32) -> (i32, i32) {
    %c0_i32 = arith.constant 0 : i32
    %c0_i32_0 = arith.constant 0 : i32
    return %arg0, %c0_i32 : i32, i32
  }
  func.func @transform_10(%arg0: i32) -> (i32, i32) {
    %c0_i32 = arith.constant 0 : i32
    %c0_i32_0 = arith.constant 0 : i32
    return %arg0, %c0_i32 : i32, i32
  }
}

</mosaic_0001>

<llo_original>
// kernel: mlp_forward_pallas.1
$region0: #{mlp_forward_pallas.1}
  #allocation0 [shape = 'u32[]', space=smem, size = 0x4, offset = 0x4, fixed_abs, tag = 'smem constant byte address 0x4 - core index']
  #allocation1 [shape = 'u32[144,128]{1,0:T(1,128)}', space=vmem, size = 0x12000, scoped, tag = 'internal scratch']
  %s0 = inlined_call_operand.vmem [shape: bf16[16,8], index: 0, kind: input, shape index: {}]
  %s1 = inlined_call_operand.vmem [shape: bf16[16,2], index: 1, kind: input, shape index: {}]
  %s2 = inlined_call_operand.vmem [shape: bf16[8,128], index: 2, kind: input, shape index: {}]
  %s3 = inlined_call_operand.vmem [shape: bf16[2,128], index: 3, kind: input, shape index: {}]
  %s4 = inlined_call_operand.vmem [shape: bf16[128,128], index: 4, kind: input, shape index: {}]
  %s5 = inlined_call_operand.vmem [shape: bf16[128,128], index: 5, kind: input, shape index: {}]
  %s6 = inlined_call_operand.vmem [shape: f32[1,128], index: 6, kind: input, shape index: {}]
  %s7 = inlined_call_operand.vmem [shape: f32[1,128], index: 7, kind: input, shape index: {}]
  %s8 = inlined_call_operand.vmem [shape: f32[1,128], index: 8, kind: input, shape index: {}]
  %s9 = inlined_call_operand.vmem [shape: f32[16,128], index: 9, kind: input, shape index: {}]
  %s10 = inlined_call_operand.vmem [shape: f32[16,128], index: 10, kind: output, shape index: {}]
  %s11 = sld [smem:[#allocation0]]
  $region50: #{mlp_forward_pallas.1} parent=0
    _
  %s13 = ssub.s32 1, %s11
  %s14 = scalar_select 0, %s13, %s11
  // Predicated region
  $region2: #{mlp_forward_pallas.1} parent=0 // pred_check
    _
  $region3: #{mlp_forward_pallas.1} parent=0 // pred_check_branch
    %16 = sbr.rel (0) target = $region5
  $region4: #{mlp_forward_pallas.1} parent=0 // pred_region
    _
  $region5: #{mlp_forward_pallas.1} parent=0 // pred_fallthru
    _
  // Predicated region
  $region6: #{mlp_forward_pallas.1} parent=0 // pred_check
    _
  $region7: #{mlp_forward_pallas.1} parent=0 // pred_check_branch
    %18 = sbr.rel (0) target = $region9
  $region8: #{mlp_forward_pallas.1} parent=0 // pred_region
    _
  $region9: #{mlp_forward_pallas.1} parent=0 // pred_fallthru
    _
  // Predicated region
  $region10: #{mlp_forward_pallas.1} parent=0 // pred_check
    _
  $region11: #{mlp_forward_pallas.1} parent=0 // pred_check_branch
    %20 = sbr.rel (0) target = $region13
  $region12: #{mlp_forward_pallas.1} parent=0 // pred_region
    _
  $region13: #{mlp_forward_pallas.1} parent=0 // pred_fallthru
    _
  // Predicated region
  $region14: #{mlp_forward_pallas.1} parent=0 // pred_check
    _
  $region15: #{mlp_forward_pallas.1} parent=0 // pred_check_branch
    %22 = sbr.rel (0) target = $region17
  $region16: #{mlp_forward_pallas.1} parent=0 // pred_region
    _
  $region17: #{mlp_forward_pallas.1} parent=0 // pred_fallthru
    _
  // Predicated region
  $region18: #{mlp_forward_pallas.1} parent=0 // pred_check
    _
  $region19: #{mlp_forward_pallas.1} parent=0 // pred_check_branch
    %24 = sbr.rel (0) target = $region21
  $region20: #{mlp_forward_pallas.1} parent=0 // pred_region
    _
  $region21: #{mlp_forward_pallas.1} parent=0 // pred_fallthru
    _
  // Predicated region
  $region22: #{mlp_forward_pallas.1} parent=0 // pred_check
    _
  $region23: #{mlp_forward_pallas.1} parent=0 // pred_check_branch
    %26 = sbr.rel (0) target = $region25
  $region24: #{mlp_forward_pallas.1} parent=0 // pred_region
    _
  $region25: #{mlp_forward_pallas.1} parent=0 // pred_fallthru
    _
  // Predicated region
  $region26: #{mlp_forward_pallas.1} parent=0 // pred_check
    _
  $region27: #{mlp_forward_pallas.1} parent=0 // pred_check_branch
    %28 = sbr.rel (0) target = $region29
  $region28: #{mlp_forward_pallas.1} parent=0 // pred_region
    _
  $region29: #{mlp_forward_pallas.1} parent=0 // pred_fallthru
    _
  // Predicated region
  $region30: #{mlp_forward_pallas.1} parent=0 // pred_check
    _
  $region31: #{mlp_forward_pallas.1} parent=0 // pred_check_branch
    %30 = sbr.rel (0) target = $region33
  $region32: #{mlp_forward_pallas.1} parent=0 // pred_region
    _
  $region33: #{mlp_forward_pallas.1} parent=0 // pred_fallthru
    _
  // Predicated region
  $region34: #{mlp_forward_pallas.1} parent=0 // pred_check
    _
  $region35: #{mlp_forward_pallas.1} parent=0 // pred_check_branch
    %32 = sbr.rel (0) target = $region37
  $region36: #{mlp_forward_pallas.1} parent=0 // pred_region
    _
  $region37: #{mlp_forward_pallas.1} parent=0 // pred_fallthru
    _
  // Predicated region
  $region38: #{mlp_forward_pallas.1} parent=0 // pred_check
    _
  $region39: #{mlp_forward_pallas.1} parent=0 // pred_check_branch
    %34 = sbr.rel (0) target = $region41
  $region40: #{mlp_forward_pallas.1} parent=0 // pred_region
    _
  $region41: #{mlp_forward_pallas.1} parent=0 // pred_fallthru
    _
  %v36 = vld [vmem:[%s0] sm:$0xf]
  %v37 = vld [vmem:[%s0 + $0x4] sm:$0xf]
  %v38 = vld [vmem:[%s2] sm:$0xf]
  %v39 = vld [vmem:[%s1] sm:$0xf]
  %v40 = vld [vmem:[%s1 + $0x4] sm:$0xf]
  %v41 = vld [vmem:[%s3] sm:$0x1]
  %v44 = vunpack.c.l.b16 %v39
  %v45 = vunpack.c.l.b16 %v40
  %v46 = vpack.c.b16 %v45, %v44
  %vm47 = vcmask 15360
  %v49 = vsel %vm47, %v46, 0
  %vm51 = vcmask 1040384
  %v53 = vsel %vm51, %v41, 0
  %55 = vmatprep.subr.bf16.mxu0 0
  %56 = vmatpush1.bf16.msra.mxu0 %v53
  %57 = vmatprep.subr.bf16.mxu0 0
  %58 = vmatpush1.bf16.msra.mxu0 0
  %59 = vmatprep.subr.bf16.mxu0 0
  %60 = vmatpush1.bf16.msra.mxu0 0
  %61 = vmatprep.subr.bf16.mxu0 0
  %62 = vmatpush1.bf16.msra.mxu0 0
  %63 = vmatprep.subr.bf16.mxu0 0
  %64 = vmatpush1.bf16.msra.mxu0 0
  %65 = vmatprep.subr.bf16.mxu0 0
  %66 = vmatpush1.bf16.msra.mxu0 0
  %67 = vmatprep.subr.bf16.mxu0 0
  %68 = vmatpush1.bf16.msra.mxu0 0
  %69 = vmatprep.subr.bf16.mxu0 0
  %70 = vmatpush1.bf16.msra.mxu0 0
  %71 = vmatprep.subr.bf16.mxu0 0
  %72 = vmatpush1.bf16.msra.mxu0 0
  %73 = vmatprep.subr.bf16.mxu0 0
  %74 = vmatpush1.bf16.msra.mxu0 0
  %75 = vmatprep.subr.bf16.mxu0 0
  %76 = vmatpush1.bf16.msra.mxu0 0
  %77 = vmatprep.subr.bf16.mxu0 0
  %78 = vmatpush1.bf16.msra.mxu0 0
  %79 = vmatprep.subr.bf16.mxu0 0
  %80 = vmatpush1.bf16.msra.mxu0 0
  %81 = vmatprep.subr.bf16.mxu0 0
  %82 = vmatpush1.bf16.msra.mxu0 0
  %83 = vmatprep.subr.bf16.mxu0 0
  %84 = vmatpush1.bf16.msra.mxu0 0
  %85 = vmatprep.subr.bf16.mxu0 0
  %86 = vmatpush1.bf16.msra.mxu0 0
  %87 = vmatprep.mubr.bf16.mxu0 0
  %88 = vmatmul.mubr.bf16.gmra.mrb[0].mxu0 %v49
  %v89 = vpop.f32.mrb[0].mxu0
  %v90 = vadd.f32 0.0, %v89
  %v91 = vpop.f32.mrb[0].mxu0
  %v92 = vpop.f32.mrb[0].mxu0
  %v93 = vadd.f32 0.0, %v92
  %v94 = vpop.f32.mrb[0].mxu0
  %95 = vdwg.mxu0
  %v98 = vunpack.c.l.b16 %v36
  %v99 = vunpack.c.l.b16 %v37
  %v100 = vpack.c.b16 %v99, %v98
  %vm101 = vcmask 64512
  %v103 = vsel %vm101, %v100, 0
  %vm105 = vcmask 1043456
  %v107 = vsel %vm105, %v38, 0
  %109 = vmatprep.subr.bf16.mxu0 0
  %110 = vmatpush1.bf16.msra.mxu0 %v107
  %111 = vmatprep.subr.bf16.mxu0 0
  %112 = vmatpush1.bf16.msra.mxu0 0
  %113 = vmatprep.subr.bf16.mxu0 0
  %114 = vmatpush1.bf16.msra.mxu0 0
  %115 = vmatprep.subr.bf16.mxu0 0
  %116 = vmatpush1.bf16.msra.mxu0 0
  %117 = vmatprep.subr.bf16.mxu0 0
  %118 = vmatpush1.bf16.msra.mxu0 0
  %119 = vmatprep.subr.bf16.mxu0 0
  %120 = vmatpush1.bf16.msra.mxu0 0
  %121 = vmatprep.subr.bf16.mxu0 0
  %122 = vmatpush1.bf16.msra.mxu0 0
  %123 = vmatprep.subr.bf16.mxu0 0
  %124 = vmatpush1.bf16.msra.mxu0 0
  %125 = vmatprep.subr.bf16.mxu0 0
  %126 = vmatpush1.bf16.msra.mxu0 0
  %127 = vmatprep.subr.bf16.mxu0 0
  %128 = vmatpush1.bf16.msra.mxu0 0
  %129 = vmatprep.subr.bf16.mxu0 0
  %130 = vmatpush1.bf16.msra.mxu0 0
  %131 = vmatprep.subr.bf16.mxu0 0
  %132 = vmatpush1.bf16.msra.mxu0 0
  %133 = vmatprep.subr.bf16.mxu0 0
  %134 = vmatpush1.bf16.msra.mxu0 0
  %135 = vmatprep.subr.bf16.mxu0 0
  %136 = vmatpush1.bf16.msra.mxu0 0
  %137 = vmatprep.subr.bf16.mxu0 0
  %138 = vmatpush1.bf16.msra.mxu0 0
  %139 = vmatprep.subr.bf16.mxu0 0
  %140 = vmatpush1.bf16.msra.mxu0 0
  %141 = vmatprep.mubr.bf16.mxu0 0
  %142 = vmatmul.mubr.bf16.gmra.mrb[0].mxu0 %v103
  %v143 = vpop.f32.mrb[0].mxu0
  %v144 = vadd.f32 %v90, %v143
  %v145 = vpop.f32.mrb[0].mxu0
  %v146 = vpop.f32.mrb[0].mxu0
  %v147 = vadd.f32 %v93, %v146
  %v148 = vpop.f32.mrb[0].mxu0
  %149 = vdwg.mxu0
  %v150 = vld [vmem:[%s6] sm:$0x1]
  %v152 = vlaneseq
  %v153 = vshrl.u32 %v152, 7
  %v154 = vsub.s32 0, %v153
  %v155 = vrot.slane %v150, %v154
  %v157 = vadd.f32 %v144, %v155
  %v158 = vadd.f32 %v147, %v155
  %v159 = vmax.f32 %v157, 0.0
  %v160 = vmax.f32 %v158, 0.0
  %v161 = vld [vmem:[%s4] sm:$0xf]
  %v162 = vld [vmem:[%s4 + $0x4] sm:$0xf]
  %v163 = vld [vmem:[%s4 + $0x8] sm:$0xf]
  %v164 = vld [vmem:[%s4 + $0xc] sm:$0xf]
  %v165 = vld [vmem:[%s4 + $0x10] sm:$0xf]
  %v166 = vld [vmem:[%s4 + $0x14] sm:$0xf]
  %v167 = vld [vmem:[%s4 + $0x18] sm:$0xf]
  %v168 = vld [vmem:[%s4 + $0x1c] sm:$0xf]
  %v169 = vld [vmem:[%s4 + $0x20] sm:$0xf]
  %v170 = vld [vmem:[%s4 + $0x24] sm:$0xf]
  %v171 = vld [vmem:[%s4 + $0x28] sm:$0xf]
  %v172 = vld [vmem:[%s4 + $0x2c] sm:$0xf]
  %v173 = vld [vmem:[%s4 + $0x30] sm:$0xf]
  %v174 = vld [vmem:[%s4 + $0x34] sm:$0xf]
  %v175 = vld [vmem:[%s4 + $0x38] sm:$0xf]
  %v176 = vld [vmem:[%s4 + $0x3c] sm:$0xf]
  %v177 = vpack.c.bf16 %v160, %v159
  %v178 = vld [vmem:[%s7] sm:$0x1]
  %v180 = vlaneseq
  %v181 = vshrl.u32 %v180, 7
  %v182 = vsub.s32 0, %v181
  %v183 = vrot.slane %v178, %v182
  %v201 = vunpack.c.l.b16 %v161
  %v202 = vunpack.c.l.b16 %v162
  %v203 = vunpack.c.l.b16 %v163
  %v204 = vunpack.c.l.b16 %v164
  %v205 = vunpack.c.l.b16 %v165
  %v206 = vunpack.c.l.b16 %v166
  %v207 = vunpack.c.l.b16 %v167
  %v208 = vunpack.c.l.b16 %v168
  %v209 = vunpack.c.l.b16 %v169
  %v210 = vunpack.c.l.b16 %v170
  %v211 = vunpack.c.l.b16 %v171
  %v212 = vunpack.c.l.b16 %v172
  %v213 = vunpack.c.l.b16 %v173
  %v214 = vunpack.c.l.b16 %v174
  %v215 = vunpack.c.l.b16 %v175
  %v216 = vunpack.c.l.b16 %v176
  %v217 = vpack.c.b16 %v202, %v201
  %v218 = vpack.c.b16 %v204, %v203
  %v219 = vpack.c.b16 %v206, %v205
  %v220 = vpack.c.b16 %v208, %v207
  %v221 = vpack.c.b16 %v210, %v209
  %v222 = vpack.c.b16 %v212, %v211
  %v223 = vpack.c.b16 %v214, %v213
  %v224 = vpack.c.b16 %v216, %v215
  %233 = vmatprep.subr.bf16.mxu0 0
  %234 = vmatpush1.bf16.msra.mxu0 %v217
  %235 = vmatprep.subr.bf16.mxu0 0
  %236 = vmatpush1.bf16.msra.mxu0 %v218
  %237 = vmatprep.subr.bf16.mxu0 0
  %238 = vmatpush1.bf16.msra.mxu0 %v219
  %239 = vmatprep.subr.bf16.mxu0 0
  %240 = vmatpush1.bf16.msra.mxu0 %v220
  %241 = vmatprep.subr.bf16.mxu0 0
  %242 = vmatpush1.bf16.msra.mxu0 %v221
  %243 = vmatprep.subr.bf16.mxu0 0
  %244 = vmatpush1.bf16.msra.mxu0 %v222
  %245 = vmatprep.subr.bf16.mxu0 0
  %246 = vmatpush1.bf16.msra.mxu0 %v223
  %247 = vmatprep.subr.bf16.mxu0 0
  %248 = vmatpush1.bf16.msra.mxu0 %v224
  %249 = vmatprep.subr.bf16.mxu0 0
  %250 = vmatpush1.bf16.msra.mxu0 0
  %251 = vmatprep.subr.bf16.mxu0 0
  %252 = vmatpush1.bf16.msra.mxu0 0
  %253 = vmatprep.subr.bf16.mxu0 0
  %254 = vmatpush1.bf16.msra.mxu0 0
  %255 = vmatprep.subr.bf16.mxu0 0
  %256 = vmatpush1.bf16.msra.mxu0 0
  %257 = vmatprep.subr.bf16.mxu0 0
  %258 = vmatpush1.bf16.msra.mxu0 0
  %259 = vmatprep.subr.bf16.mxu0 0
  %260 = vmatpush1.bf16.msra.mxu0 0
  %261 = vmatprep.subr.bf16.mxu0 0
  %262 = vmatpush1.bf16.msra.mxu0 0
  %263 = vmatprep.subr.bf16.mxu0 0
  %264 = vmatpush1.bf16.msra.mxu0 0
  %265 = vmatprep.mubr.bf16.mxu0 0
  %266 = vmatmul.mubr.bf16.gmra.mrb[0].mxu0 %v177
  %v267 = vpop.f32.mrb[0].mxu0
  %v268 = vadd.f32 %v183, %v267
  %v269 = vpop.f32.mrb[0].mxu0
  %v270 = vpop.f32.mrb[0].mxu0
  %v271 = vadd.f32 %v183, %v270
  %v272 = vpop.f32.mrb[0].mxu0
  %273 = vdwg.mxu0
  %v274 = vmax.f32 %v268, 0.0
  %v275 = vmax.f32 %v271, 0.0
  %v276 = vld [vmem:[%s5] sm:$0xf]
  %v277 = vld [vmem:[%s5 + $0x4] sm:$0xf]
  %v278 = vld [vmem:[%s5 + $0x8] sm:$0xf]
  %v279 = vld [vmem:[%s5 + $0xc] sm:$0xf]
  %v280 = vld [vmem:[%s5 + $0x10] sm:$0xf]
  %v281 = vld [vmem:[%s5 + $0x14] sm:$0xf]
  %v282 = vld [vmem:[%s5 + $0x18] sm:$0xf]
  %v283 = vld [vmem:[%s5 + $0x1c] sm:$0xf]
  %v284 = vld [vmem:[%s5 + $0x20] sm:$0xf]
  %v285 = vld [vmem:[%s5 + $0x24] sm:$0xf]
  %v286 = vld [vmem:[%s5 + $0x28] sm:$0xf]
  %v287 = vld [vmem:[%s5 + $0x2c] sm:$0xf]
  %v288 = vld [vmem:[%s5 + $0x30] sm:$0xf]
  %v289 = vld [vmem:[%s5 + $0x34] sm:$0xf]
  %v290 = vld [vmem:[%s5 + $0x38] sm:$0xf]
  %v291 = vld [vmem:[%s5 + $0x3c] sm:$0xf]
  %v292 = vpack.c.bf16 %v275, %v274
  %v293 = vld [vmem:[%s8] sm:$0x1]
  %v295 = vlaneseq
  %v296 = vshrl.u32 %v295, 7
  %v297 = vsub.s32 0, %v296
  %v298 = vrot.slane %v293, %v297
  %v316 = vunpack.c.l.b16 %v276
  %v317 = vunpack.c.l.b16 %v277
  %v318 = vunpack.c.l.b16 %v278
  %v319 = vunpack.c.l.b16 %v279
  %v320 = vunpack.c.l.b16 %v280
  %v321 = vunpack.c.l.b16 %v281
  %v322 = vunpack.c.l.b16 %v282
  %v323 = vunpack.c.l.b16 %v283
  %v324 = vunpack.c.l.b16 %v284
  %v325 = vunpack.c.l.b16 %v285
  %v326 = vunpack.c.l.b16 %v286
  %v327 = vunpack.c.l.b16 %v287
  %v328 = vunpack.c.l.b16 %v288
  %v329 = vunpack.c.l.b16 %v289
  %v330 = vunpack.c.l.b16 %v290
  %v331 = vunpack.c.l.b16 %v291
  %v332 = vpack.c.b16 %v317, %v316
  %v333 = vpack.c.b16 %v319, %v318
  %v334 = vpack.c.b16 %v321, %v320
  %v335 = vpack.c.b16 %v323, %v322
  %v336 = vpack.c.b16 %v325, %v324
  %v337 = vpack.c.b16 %v327, %v326
  %v338 = vpack.c.b16 %v329, %v328
  %v339 = vpack.c.b16 %v331, %v330
  %348 = vmatprep.subr.bf16.mxu0 0
  %349 = vmatpush1.bf16.msra.mxu0 %v332
  %350 = vmatprep.subr.bf16.mxu0 0
  %351 = vmatpush1.bf16.msra.mxu0 %v333
  %352 = vmatprep.subr.bf16.mxu0 0
  %353 = vmatpush1.bf16.msra.mxu0 %v334
  %354 = vmatprep.subr.bf16.mxu0 0
  %355 = vmatpush1.bf16.msra.mxu0 %v335
  %356 = vmatprep.subr.bf16.mxu0 0
  %357 = vmatpush1.bf16.msra.mxu0 %v336
  %358 = vmatprep.subr.bf16.mxu0 0
  %359 = vmatpush1.bf16.msra.mxu0 %v337
  %360 = vmatprep.subr.bf16.mxu0 0
  %361 = vmatpush1.bf16.msra.mxu0 %v338
  %362 = vmatprep.subr.bf16.mxu0 0
  %363 = vmatpush1.bf16.msra.mxu0 %v339
  %364 = vmatprep.subr.bf16.mxu0 0
  %365 = vmatpush1.bf16.msra.mxu0 0
  %366 = vmatprep.subr.bf16.mxu0 0
  %367 = vmatpush1.bf16.msra.mxu0 0
  %368 = vmatprep.subr.bf16.mxu0 0
  %369 = vmatpush1.bf16.msra.mxu0 0
  %370 = vmatprep.subr.bf16.mxu0 0
  %371 = vmatpush1.bf16.msra.mxu0 0
  %372 = vmatprep.subr.bf16.mxu0 0
  %373 = vmatpush1.bf16.msra.mxu0 0
  %374 = vmatprep.subr.bf16.mxu0 0
  %375 = vmatpush1.bf16.msra.mxu0 0
  %376 = vmatprep.subr.bf16.mxu0 0
  %377 = vmatpush1.bf16.msra.mxu0 0
  %378 = vmatprep.subr.bf16.mxu0 0
  %379 = vmatpush1.bf16.msra.mxu0 0
  %380 = vmatprep.mubr.bf16.mxu0 0
  %381 = vmatmul.mubr.bf16.gmra.mrb[0].mxu0 %v292
  %v382 = vpop.f32.mrb[0].mxu0
  %v383 = vadd.f32 %v298, %v382
  %v384 = vpop.f32.mrb[0].mxu0
  %v385 = vpop.f32.mrb[0].mxu0
  %v386 = vadd.f32 %v298, %v385
  %v387 = vpop.f32.mrb[0].mxu0
  %388 = vdwg.mxu0
  %v389 = vld [vmem:[%s9] sm:$0xff]
  %v390 = vld [vmem:[%s9 + $0x8] sm:$0xff]
  %v391 = vadd.f32 %v383, %v389
  %v392 = vadd.f32 %v386, %v390
  %393 = vst [vmem:[%s10] sm:$0xff] %v391
  %394 = vst [vmem:[%s10 + $0x8] sm:$0xff] %v392
  // Predicated region
  $region42: #{mlp_forward_pallas.1} parent=0 // pred_check
    _
  $region43: #{mlp_forward_pallas.1} parent=0 // pred_check_branch
    %396 = sbr.rel (0) target = $region45
  $region44: #{mlp_forward_pallas.1} parent=0 // pred_region
    _
  $region45: #{mlp_forward_pallas.1} parent=0 // pred_fallthru
    _
  // Predicated region
  $region46: #{mlp_forward_pallas.1} parent=0 // pred_check
    _
  $region47: #{mlp_forward_pallas.1} parent=0 // pred_check_branch
    %398 = sbr.rel (0) target = $region49
  $region48: #{mlp_forward_pallas.1} parent=0 // pred_region
    _
  $region49: #{mlp_forward_pallas.1} parent=0 // pred_fallthru
    _

</llo_original>
